<compile_context>
chip_gen: v6e
topology: v6e:2x2x1
jax: 0.10.0
libtpu: 0.0.40
codegen_flags: <defaults>
</compile_context>

<pallas_src>
import functools

import jax
import jax.numpy as jnp
import numpy as np
from jax.experimental import pallas as pl
from jax.experimental.pallas import tpu as pltpu


def _dma_copy_kernel(x_hbm_ref, o_hbm_ref, sem):
    # Single whole-buffer HBM->HBM DMA: identity copy at HBM roofline with
    # zero VMEM footprint and zero per-step grid overhead.
    cp = pltpu.make_async_copy(x_hbm_ref, o_hbm_ref, sem)
    cp.start()
    cp.wait()


def _resolve_shape(shape, flat):
    """Support torch-style -1 inference in the target per-batch shape."""
    shape = tuple(int(s) for s in shape)
    if -1 in shape:
        idx = shape.index(-1)
        rest = 1
        for j, s in enumerate(shape):
            if j != idx:
                rest *= s
        shape = shape[:idx] + (flat // rest,) + shape[idx + 1:]
    return shape


@functools.partial(jax.jit, static_argnames=("out_shape",))
def _materialized_view(x, out_shape):
    """Metadata reshape + independent physical copy via direct HBM->HBM DMA."""
    xr = jnp.reshape(x, out_shape)            # metadata-only under jit
    nbytes = xr.size * xr.dtype.itemsize      # static Python ints
    return pl.pallas_call(
        _dma_copy_kernel,
        out_shape=jax.ShapeDtypeStruct(out_shape, x.dtype),
        in_specs=[pl.BlockSpec(memory_space=pl.ANY)],
        out_specs=pl.BlockSpec(memory_space=pl.ANY),
        scratch_shapes=[pltpu.SemaphoreType.DMA],
        # Pure-bandwidth op: tell the XLA scheduler so it can overlap it.
        cost_estimate=pl.CostEstimate(
            flops=0, transcendentals=0, bytes_accessed=2 * nbytes),
    )(xr)


def pallas_view(x, shape, materialize=False):
    """Equivalent of View(shape).forward(x): reshape to (batch, *shape).

    materialize=False (default): metadata-only reshape — zero HBM traffic,
    exactly matching torch .view on a contiguous tensor.
    materialize=True: produce an independent physical copy via a single
    direct HBM->HBM DMA inside a Pallas kernel.
    """
    batch = int(x.shape[0])
    flat = 1
    for d in x.shape[1:]:
        flat *= int(d)
    shape = _resolve_shape(shape, flat)
    tgt_flat = 1
    for d in shape:
        tgt_flat *= int(d)
    assert flat == tgt_flat, (
        f"cannot view input of per-batch size {flat} as shape {shape}"
    )
    out_shape = (batch,) + shape

    if not materialize or x.size == 0:
        # A view is metadata-only; let XLA do it for free.
        return x.reshape(out_shape)

    return _materialized_view(x, out_shape)


if __name__ == "__main__":
    key = jax.random.PRNGKey(0)
    k1, k2, k3 = jax.random.split(key, 3)

    # Case 1: small NCHW f32 input, view (2,4,16,16) -> (2,4,256).
    x1 = jax.random.normal(k1, (2, 4, 16, 16), dtype=jnp.float32)
    ref1 = np.asarray(x1).reshape(2, 4, 256)
    fast1 = pallas_view(x1, (4, 256))                          # metadata path
    out1 = jax.block_until_ready(pallas_view(x1, (4, 256), materialize=True))
    assert out1.shape == (2, 4, 256) and out1.dtype == x1.dtype
    np.testing.assert_array_equal(np.asarray(fast1), ref1)
    np.testing.assert_array_equal(np.asarray(out1), ref1)

    # Case 2: larger f32 input, full flatten per batch with -1 inference.
    x2 = jax.random.normal(k2, (2, 65, 64, 64), dtype=jnp.float32)
    ref2 = np.asarray(x2).reshape(2, 65 * 64 * 64)
    out2 = jax.block_until_ready(pallas_view(x2, (-1,), materialize=True))
    assert out2.shape == (2, 65 * 64 * 64)
    np.testing.assert_array_equal(np.asarray(out2), ref2)

    # Case 3: packed dtype (bf16), full flatten per batch.
    x3 = jax.random.normal(k3, (2, 4, 16, 16), dtype=jnp.bfloat16)
    ref3 = np.asarray(x3).reshape(2, 1024)
    out3 = jax.block_until_ready(pallas_view(x3, (1024,), materialize=True))
    assert out3.dtype == jnp.bfloat16
    np.testing.assert_array_equal(np.asarray(out3), ref3)

    # Case 4: odd sizes (not a multiple of 128) now still materialize a copy.
    x4 = jax.random.normal(k1, (2, 3, 5, 7), dtype=jnp.float32)
    ref4 = np.asarray(x4).reshape(2, 3, 35)
    out4 = jax.block_until_ready(pallas_view(x4, (3, 35), materialize=True))
    np.testing.assert_array_equal(np.asarray(out4), ref4)

    print("KERNEL_OK")
</pallas_src>

<mosaic_0001>
module attributes {stable_mosaic.version = 11 : i64} {
  func.func @_dma_copy_kernel(%arg0: memref<2x4x256xf32, #tpu.memory_space<any>>, %arg1: memref<2x4x256xf32, #tpu.memory_space<any>>, %arg2: memref<!tpu.dma_semaphore, #tpu.memory_space<semaphore_mem>>) attributes {dimension_semantics = [], scalar_prefetch = 0 : i64, scratch_operands = 1 : i64, tpu.core_type = #tpu.core_type<tc>} {
    tpu.enqueue_dma source(%arg0 : memref<2x4x256xf32, #tpu.memory_space<any>>) target(%arg1 : memref<2x4x256xf32, #tpu.memory_space<any>>) target_semaphore(%arg2 : memref<!tpu.dma_semaphore, #tpu.memory_space<semaphore_mem>>)
    tpu.wait_dma2 semaphore(%arg2 : memref<!tpu.dma_semaphore, #tpu.memory_space<semaphore_mem>>) src(%arg0 : memref<2x4x256xf32, #tpu.memory_space<any>>) dst(%arg1 : memref<2x4x256xf32, #tpu.memory_space<any>>)
    return
  }
}

</mosaic_0001>

<llo_original>
// kernel: _materialized_view.1
$region0: #{_materialized_view.1}
  #allocation0 [shape = 'u32[]', space=smem, size = 0x4, offset = 0x4, fixed_abs, tag = 'smem constant byte address 0x4 - core index']
  #allocation1 [shape = 'u32[144,128]{1,0:T(1,128)}', space=vmem, size = 0x12000, scoped, tag = 'internal scratch']
  #allocation2 [shape = 's32[1]{0}', space=sflag, size = 0x4, scoped, tag = 'scratch operand']
  #allocation3 [shape = 's32[]', space=sflag, size = 0x4, offset = 0, fixed_abs, tag = 'sflag constant byte address 0x0 - dummy sync flag']
  #allocation4 [shape = 's32[]', space=sflag, size = 0x4, offset = 0, fixed_abs, tag = 'sflag constant byte address 0x0 - dummy sync flag']
  #allocation5 [shape = 'u32[]', space=smem, size = 0x4, offset = 0x44, fixed_abs, tag = 'smem constant byte address 0x44 - assertion arg 0']
  #allocation6 [shape = 'u32[]', space=smem, size = 0x4, offset = 0x48, fixed_abs, tag = 'smem constant byte address 0x48 - assertion arg 1']
  %s0 = inlined_call_operand.vmem [shape: f32[2,4,256], index: 0, kind: input, shape index: {}]
  %s1 = inlined_call_operand.hbm [shape: f32[2,4,256], index: 1, kind: output, shape index: {}]
  %s2 = sld [smem:[#allocation0]]
  $region6: #{_materialized_view.1} parent=0
    _
  %s4 = ssub.s32 1, %s2
  %s5 = scalar_select 0, %s4, %s2
  // Predicated region
  $region2: #{_materialized_view.1} parent=0 // pred_check
    _
  $region3: #{_materialized_view.1} parent=0 // pred_check_branch
    %7 = sbr.rel target = $region5
  $region4: #{_materialized_view.1} parent=0 // pred_region
    %8 = sst [smem:[#allocation5]] [#allocation4]
    %9 = sst [smem:[#allocation6]] [#allocation3]
  $region5: #{_materialized_view.1} parent=0 // pred_fallthru
    _
  %11 = shalt.err (0)
  %s13 = sshll.u32 %s0, 4
  %s14 = int_to_ptr.vmem [resolvable:$true] %s13
  %16 = dma.vmem_to_hbm [thread:$0]  %s14, 256, %s1, [#allocation2]
  %s17 = smul.u32 4, 2
  %s18 = smul.u32 %s17, 1
  %s19 = smul.u32 %s18, 2
  %s20 = sshll.u32 %s19, 4
  %21 = dma.done [#allocation2], %s20
  %22 = vsyncmov [#allocation2]
  %s23 = vpop.sfrf %22
  %p24 = scmp.eq.s32.totalorder %s23, 0
  %p25 = pneg %p24
  %27 = shalt.err (%p25)

</llo_original>
